<compile_context>
chip_gen: v7x
topology: tpu7x:2x2x1
jax: 0.10.0
libtpu: 0.0.40
codegen_flags: <defaults>
</compile_context>

<pallas_src>
import functools

import jax
import jax.numpy as jnp
from jax.experimental import pallas as pl
from jax.experimental.pallas import tpu as pltpu


def _round_up(x, m):
    return ((x + m - 1) // m) * m


def _infomax_kernel(c_idx_ref, h_idx_ref, c_base_ref, hw_base_ref, b_ref, out_ref, *,
                    eff_tile, inner_tiles, n_pos, total_n):
    p = pl.program_id(0)   # outer axis ("parallel")
    i = pl.program_id(1)   # row tiles inside the slab ("arbitrary", accumulator axis)

    @pl.when(i == 0)
    def _():
        out_ref[...] = jnp.zeros_like(out_ref)

    nb_c = c_base_ref.shape[0]
    nb_h = hw_base_ref.shape[0]
    d = c_base_ref.shape[1]
    g = eff_tile // 128

    # Exact gather of the unique base rows via one-hot MXU matmuls.  The assembled (N, D)
    # c / h matrices never touch HBM; only the tiny int32 index tables are streamed.
    c_idx = c_idx_ref[...]                                         # (eff_tile, 1) int32
    h_idx = h_idx_ref[...]                                         # (eff_tile, 1) int32
    onehot_c = (jax.lax.broadcasted_iota(jnp.int32, (eff_tile, nb_c), 1)
                == c_idx).astype(c_base_ref.dtype)
    onehot_h = (jax.lax.broadcasted_iota(jnp.int32, (eff_tile, nb_h), 1)
                == h_idx).astype(hw_base_ref.dtype)
    c_rows = jnp.dot(onehot_c, c_base_ref[...], preferred_element_type=jnp.float32)
    hw_rows = jnp.dot(onehot_h, hw_base_ref[...], preferred_element_type=jnp.float32)

    # Bilinear score s = <h W, c> + b, produced directly in a lane-dense (g, 128) layout so
    # the softplus epilogue and the resident accumulator use full 128-lane vregs.
    prod = (c_rows * hw_rows).reshape(g, 128, d)
    s = jnp.sum(prod, axis=-1) + b_ref[0]                          # (g, 128) f32

    # Labels are 1 for global rows [0, n_pos) and 0 for [n_pos, total_n) by block
    # construction; rows >= total_n are padding.  Rebuilt in-registers — no label stream.
    row0 = (p * inner_tiles + i) * eff_tile
    rows = (row0
            + 128 * jax.lax.broadcasted_iota(jnp.int32, (g, 128), 0)
            + jax.lax.broadcasted_iota(jnp.int32, (g, 128), 1))
    sign = jnp.where(rows < n_pos, 1.0, -1.0).astype(jnp.float32)   # 2*lbl - 1
    valid = jnp.where(rows < total_n, 1.0, 0.0).astype(jnp.float32)

    # Fused sigmoid + BCE: -[y log p + (1-y) log(1-p)] == softplus(-sign * s) for y in {0,1};
    # min(., 100) reproduces torch BCELoss' clamp of the log terms at -100.
    z = -sign * s
    per_row = jnp.minimum(jnp.maximum(z, 0.0) + jnp.log1p(jnp.exp(-jnp.abs(z))), 100.0)

    out_ref[...] += valid * per_row                                # lane-dense accumulator


def infomax_loss_pallas(c_base, hw_base, c_idx, h_idx, n_pos, n_total, b, *,
                        tile_n=1024, num_parallel=2, base_dtype=jnp.float32):
    """c_base: [Nc, D] unique context rows; hw_base: [Nh, D] unique (h @ W) rows;
    c_idx / h_idx: [N] int32 row indices of the assembled batch; b: bilinear bias.

    Returns scalar mean BCE(sigmoid(<h W, c> + b), lbl) with lbl = 1 for rows < n_pos.
    """
    n_pos = int(n_pos)
    n_total = int(n_total)
    d = c_base.shape[1]

    # Row tiles: multiples of 128 (lane-dense epilogue; also covers bf16 sublane pack of 16).
    tile_n = _round_up(int(tile_n), 128)
    per_core = pl.cdiv(n_total, num_parallel)
    eff_tile = min(tile_n, _round_up(max(per_core, 1), 128))
    inner_tiles = pl.cdiv(per_core, eff_tile)
    padded_n = num_parallel * inner_tiles * eff_tile
    g = eff_tile // 128

    # Base matrices: rows padded to a sublane multiple; resident in VMEM across the grid.
    # TODO(synk): for base matrices too large for VMEM, switch to a manual make_async_copy
    # DMA gather (P4) driven by scalar-prefetched indices instead of the one-hot matmul.
    def _prep_base(x):
        x = x.astype(base_dtype)
        pad = _round_up(x.shape[0], 8) - x.shape[0]
        return jnp.pad(x, ((0, pad), (0, 0))) if pad else x

    c_base = _prep_base(c_base)
    hw_base = _prep_base(hw_base)
    nb_c, nb_h = c_base.shape[0], hw_base.shape[0]

    def _prep_idx(idx):
        idx = idx.astype(jnp.int32)
        return jnp.pad(idx, (0, padded_n - n_total)).reshape(padded_n, 1)

    c_idx = _prep_idx(c_idx)
    h_idx = _prep_idx(h_idx)

    b = jnp.asarray(b, jnp.float32).reshape(-1)[:1]          # (1,) f32 scalar for SMEM

    kernel = functools.partial(_infomax_kernel, eff_tile=eff_tile,
                               inner_tiles=inner_tiles, n_pos=n_pos, total_n=n_total)

    esz = jnp.dtype(base_dtype).itemsize
    cost = pl.CostEstimate(
        flops=2 * padded_n * (nb_c + nb_h) * d + 3 * padded_n * d,
        transcendentals=2 * padded_n,
        bytes_accessed=2 * padded_n * 4 + (nb_c + nb_h) * d * esz
        + num_parallel * g * 128 * 4,
    )

    # VMEM working set: double-buffered index tiles + resident bases + in-tile intermediates.
    working = (2 * 2 * eff_tile * 4
               + 2 * (nb_c + nb_h) * d * esz
               + eff_tile * (nb_c + nb_h + 4 * d) * 4
               + 2 * num_parallel * g * 128 * 4)
    vmem_limit = int(min(max(2 * working, 32 << 20), 96 << 20))

    # TODO(synk): on v7x, pltpu.CORE_PARALLEL (or pl.core_map over a TensorCore mesh) on the
    # leading axis would guarantee the 2-TC split; kept plain "parallel" for portability.
    partials = pl.pallas_call(
        kernel,
        out_shape=jax.ShapeDtypeStruct((num_parallel, g, 128), jnp.float32),
        grid_spec=pltpu.PrefetchScalarGridSpec(
            num_scalar_prefetch=0,
            grid=(num_parallel, inner_tiles),
            in_specs=[
                pl.BlockSpec((eff_tile, 1), lambda p, i: (p * inner_tiles + i, 0)),  # c_idx
                pl.BlockSpec((eff_tile, 1), lambda p, i: (p * inner_tiles + i, 0)),  # h_idx
                pl.BlockSpec((nb_c, d), lambda p, i: (0, 0)),                        # c_base
                pl.BlockSpec((nb_h, d), lambda p, i: (0, 0)),                        # hw_base
                pl.BlockSpec(memory_space=pltpu.MemorySpace.SMEM),                   # bias
            ],
            out_specs=pl.BlockSpec((None, g, 128), lambda p, i: (p, 0, 0)),
        ),
        compiler_params=pltpu.CompilerParams(
            dimension_semantics=("parallel", "arbitrary"),
            vmem_limit_bytes=vmem_limit),
        cost_estimate=cost,
    )(c_idx, h_idx, c_base, hw_base, b)

    # Tiny final reduce + mean (padding rows were masked to 0 inside the kernel).
    return jnp.sum(partials) / jnp.float32(n_total)


# ---------------------------------------------------------------------------
# Glue reproducing INFOMAX.h_c's data assembly — as index tables only (no HBM duplication).
# ---------------------------------------------------------------------------
def build_index_tables(key, n_cp, n_cn, n_hp, n_hn, n_neg):
    k1, k2, k3, k4 = jax.random.split(key, 4)
    # c indices into c_base = concat(c_p, c_n)  (random_gen's randint gather)
    c_idx = jnp.concatenate((
        jax.random.randint(k1, (n_neg * n_hp,), 0, n_cp),
        jax.random.randint(k2, (n_neg * n_hn,), 0, n_cn) + n_cp,
        jax.random.randint(k3, (n_neg * n_hn,), 0, n_cp),
        jax.random.randint(k4, (n_neg * n_hp,), 0, n_cn) + n_cp)).astype(jnp.int32)
    # h indices into h_base = concat(h_p, h_n)  (the repeat([n_neg, 1]) pattern)
    rep_p = jnp.tile(jnp.arange(n_hp, dtype=jnp.int32), n_neg)
    rep_n = jnp.tile(jnp.arange(n_hn, dtype=jnp.int32), n_neg) + n_hp
    h_idx = jnp.concatenate((rep_p, rep_n, rep_n, rep_p))
    n_pos = n_neg * (n_hp + n_hn)          # first two blocks carry label 1
    n_total = 2 * n_pos
    return c_idx, h_idx, n_pos, n_total


def infomax_forward(key, params, c_p, h_p, c_n, h_n, n_neg):
    c_idx, h_idx, n_pos, n_total = build_index_tables(
        key, c_p.shape[0], c_n.shape[0], h_p.shape[0], h_n.shape[0], n_neg)
    c_base = jnp.concatenate((c_p, c_n), axis=0)
    h_base = jnp.concatenate((h_p, h_n), axis=0)
    # h@W dedup: the bilinear's left matmul runs once on the unique h rows (tiny matmul).
    hw_base = jnp.dot(h_base, params["w_hc"], preferred_element_type=jnp.float32)
    return infomax_loss_pallas(c_base, hw_base, c_idx, h_idx, n_pos, n_total,
                               params["b_hc"])


def infomax_reference(c_p, h_p, c_n, h_n, c_idx, h_idx, n_pos, n_total, w, b):
    # Torch-faithful reference: assemble the duplicated batch, nn.Bilinear, sigmoid,
    # BCELoss(mean) with the -100 log clamp. Pure f32.
    c_base = jnp.concatenate((c_p, c_n), axis=0)
    h_base = jnp.concatenate((h_p, h_n), axis=0)
    c = c_base[c_idx]
    h = h_base[h_idx]
    lbl = (jnp.arange(n_total) < n_pos).astype(jnp.float32).reshape(-1, 1)
    s = jnp.sum((h @ w) * c, axis=-1, keepdims=True) + b.reshape(-1)[0]
    p = jax.nn.sigmoid(s)
    loss = -(lbl * jnp.maximum(jnp.log(p), -100.0)
             + (1.0 - lbl) * jnp.maximum(jnp.log1p(-p), -100.0))
    return jnp.mean(loss)


if __name__ == "__main__":
    n_h = 32      # embedding dimension
    n_neg = 2     # negatives per positive
    n_p = 8       # positive rows
    n_n = 8       # negative rows

    key = jax.random.PRNGKey(0)
    kcp, khp, kcn, khn, kw, kb, kidx = jax.random.split(key, 7)

    c_p = jax.random.normal(kcp, (n_p, n_h), jnp.float32)
    h_p = jax.random.normal(khp, (n_p, n_h), jnp.float32)
    c_n = jax.random.normal(kcn, (n_n, n_h), jnp.float32)
    h_n = jax.random.normal(khn, (n_n, n_h), jnp.float32)

    # nn.Bilinear(n_h, n_h, 1): weight (1, n_h, n_h) ~ U(-1/sqrt(n_h), 1/sqrt(n_h)), bias (1,)
    bound = 1.0 / jnp.sqrt(jnp.float32(n_h))
    params = {
        "w_hc": jax.random.uniform(kw, (n_h, n_h), jnp.float32, -bound, bound),
        "b_hc": jax.random.uniform(kb, (1, 1), jnp.float32, -bound, bound),
    }
    # TODO(synk): disc_cc / disc_hh and the Dropout(0.1) mask are unused in forward(); not implemented.
    # TODO(synk): for D < 128 (demo D=32), packing 128/D logical rows per 128-lane vreg row would
    # raise MXU/VPU lane utilization further; kept generic (any D) here.

    loss = infomax_forward(kidx, params, c_p, h_p, c_n, h_n, n_neg)
    loss = jax.block_until_ready(loss)

    # Cross-check against a pure-JAX, torch-order reference on the same sampled indices.
    c_idx, h_idx, n_pos, n_total = build_index_tables(kidx, n_p, n_n, n_p, n_n, n_neg)
    ref = infomax_reference(c_p, h_p, c_n, h_n, c_idx, h_idx, n_pos, n_total,
                            params["w_hc"], params["b_hc"])

    assert jnp.allclose(loss, ref, atol=1e-4, rtol=1e-4), (loss, ref)
    print("KERNEL_OK")
</pallas_src>

<mosaic_0001>
module attributes {stable_mosaic.version = 11 : i64} {
  func.func @_infomax_kernel(%arg0: i32, %arg1: i32, %arg2: memref<128x1xi32, #tpu.memory_space<vmem>>, %arg3: memref<128x1xi32, #tpu.memory_space<vmem>>, %arg4: memref<16x32xf32, #tpu.memory_space<vmem>>, %arg5: memref<16x32xf32, #tpu.memory_space<vmem>>, %arg6: memref<1xf32, #tpu.memory_space<smem>>, %arg7: memref<1x1x128xf32, #tpu.memory_space<vmem>>) attributes {dimension_semantics = [#tpu.dimension_semantics<parallel>, #tpu.dimension_semantics<arbitrary>], iteration_bounds = array<i64: 2, 1>, scalar_prefetch = 0 : i64, scratch_operands = 0 : i64, tpu.core_type = #tpu.core_type<tc>, window_params = [{transform_indices = @transform_0, window_bounds = array<i64: 128, 1>}, {transform_indices = @transform_1, window_bounds = array<i64: 128, 1>}, {pipeline_mode = #tpu.pipeline_mode<synchronous>, transform_indices = @transform_2, window_bounds = array<i64: 16, 32>}, {pipeline_mode = #tpu.pipeline_mode<synchronous>, transform_indices = @transform_3, window_bounds = array<i64: 16, 32>}, {transform_indices = @transform_4, window_bounds = array<i64: 1>}, {transform_indices = @transform_5, window_bounds = array<i64: 1, 1, 128>}]} {
    %c0_i32 = arith.constant 0 : i32
    %0 = arith.cmpi eq, %arg1, %c0_i32 : i32
    %1 = arith.extui %0 : i1 to i32
    %c0_i32_0 = arith.constant 0 : i32
    %2 = arith.cmpi ne, %1, %c0_i32_0 : i32
    scf.if %2 {
      %cst_26 = arith.constant 0.000000e+00 : f32
      %65 = vector.broadcast %cst_26 : f32 to vector<1x128xf32>
      %c0_27 = arith.constant 0 : index
      %c0_28 = arith.constant 0 : index
      %c0_29 = arith.constant 0 : index
      %66 = vector.load %arg7[%c0_27, %c0_28, %c0_29] : memref<1x1x128xf32, #tpu.memory_space<vmem>>, vector<1x1x128xf32>
      %67 = vector.shape_cast %66 : vector<1x1x128xf32> to vector<1x128xf32>
      %68 = vector.shape_cast %65 : vector<1x128xf32> to vector<1x1x128xf32>
      tpu.vector_store %arg7[%c0_27, %c0_28, %c0_29], %68 {strides = array<i32>} : memref<1x1x128xf32, #tpu.memory_space<vmem>>, vector<1x1x128xf32>,
    } else {
    }
    %c0 = arith.constant 0 : index
    %c0_1 = arith.constant 0 : index
    %3 = vector.load %arg2[%c0, %c0_1] : memref<128x1xi32, #tpu.memory_space<vmem>>, vector<128x1xi32>
    %c0_2 = arith.constant 0 : index
    %c0_3 = arith.constant 0 : index
    %4 = vector.load %arg3[%c0_2, %c0_3] : memref<128x1xi32, #tpu.memory_space<vmem>>, vector<128x1xi32>
    %5 = tpu.iota {dimensions = array<i32: 1>} : vector<128x16xi32>
    %6 = vector.broadcast %3 : vector<128x1xi32> to vector<128x16xi32>
    %7 = arith.cmpi eq, %5, %6 : vector<128x16xi32>
    %8 = arith.extui %7 : vector<128x16xi1> to vector<128x16xi32>
    %9 = arith.sitofp %8 : vector<128x16xi32> to vector<128x16xf32>
    %10 = tpu.iota {dimensions = array<i32: 1>} : vector<128x16xi32>
    %11 = vector.broadcast %4 : vector<128x1xi32> to vector<128x16xi32>
    %12 = arith.cmpi eq, %10, %11 : vector<128x16xi32>
    %13 = arith.extui %12 : vector<128x16xi1> to vector<128x16xi32>
    %14 = arith.sitofp %13 : vector<128x16xi32> to vector<128x16xf32>
    %c0_4 = arith.constant 0 : index
    %c0_5 = arith.constant 0 : index
    %15 = vector.load %arg4[%c0_4, %c0_5] : memref<16x32xf32, #tpu.memory_space<vmem>>, vector<16x32xf32>
    %cst = arith.constant dense<0.000000e+00> : vector<128x32xf32>
    %16 = tpu.matmul %9, %15, %cst {dimension_numbers = #tpu.dot_dimension_numbers<[1], [0], [0], [1], [0, 0, 1, 1], [], []>} : vector<128x16xf32>, vector<16x32xf32>, vector<128x32xf32> -> vector<128x32xf32>
    %c0_6 = arith.constant 0 : index
    %c0_7 = arith.constant 0 : index
    %17 = vector.load %arg5[%c0_6, %c0_7] : memref<16x32xf32, #tpu.memory_space<vmem>>, vector<16x32xf32>
    %cst_8 = arith.constant dense<0.000000e+00> : vector<128x32xf32>
    %18 = tpu.matmul %14, %17, %cst_8 {dimension_numbers = #tpu.dot_dimension_numbers<[1], [0], [0], [1], [0, 0, 1, 1], [], []>} : vector<128x16xf32>, vector<16x32xf32>, vector<128x32xf32> -> vector<128x32xf32>
    %19 = arith.mulf %16, %18 : vector<128x32xf32>
    %20 = vector.shape_cast %19 : vector<128x32xf32> to vector<1x128x32xf32>
    %cst_9 = arith.constant dense<0.000000e+00> : vector<1x128xf32>
    %21 = vector.multi_reduction <add>, %20, %cst_9 [2] : vector<1x128x32xf32> to vector<1x128xf32>
    %c0_10 = arith.constant 0 : index
    %22 = memref.load %arg6[%c0_10] : memref<1xf32, #tpu.memory_space<smem>>
    %23 = vector.broadcast %22 : f32 to vector<1x128xf32>
    %24 = arith.addf %21, %23 : vector<1x128xf32>
    %c1_i32 = arith.constant 1 : i32
    %25 = arith.muli %arg0, %c1_i32 : i32
    %26 = arith.addi %25, %arg1 : i32
    %c128_i32 = arith.constant 128 : i32
    %27 = arith.muli %26, %c128_i32 : i32
    %28 = tpu.iota {dimensions = array<i32: 0>} : vector<1x128xi32>
    %c128_i32_11 = arith.constant 128 : i32
    %29 = vector.broadcast %c128_i32_11 : i32 to vector<1x128xi32>
    %30 = arith.muli %29, %28 : vector<1x128xi32>
    %31 = vector.broadcast %27 : i32 to vector<1x128xi32>
    %32 = arith.addi %31, %30 : vector<1x128xi32>
    %33 = tpu.iota {dimensions = array<i32: 1>} : vector<1x128xi32>
    %34 = arith.addi %32, %33 : vector<1x128xi32>
    %c32_i32 = arith.constant 32 : i32
    %35 = vector.broadcast %c32_i32 : i32 to vector<1x128xi32>
    %36 = arith.cmpi slt, %34, %35 : vector<1x128xi32>
    %cst_12 = arith.constant 1.000000e+00 : f32
    %cst_13 = arith.constant -1.000000e+00 : f32
    %37 = vector.broadcast %cst_12 : f32 to vector<1x128xf32>
    %38 = vector.broadcast %cst_13 : f32 to vector<1x128xf32>
    %39 = arith.select %36, %37, %38 : vector<1x128xi1>, vector<1x128xf32>
    %c64_i32 = arith.constant 64 : i32
    %40 = vector.broadcast %c64_i32 : i32 to vector<1x128xi32>
    %41 = arith.cmpi slt, %34, %40 : vector<1x128xi32>
    %cst_14 = arith.constant 1.000000e+00 : f32
    %cst_15 = arith.constant 0.000000e+00 : f32
    %42 = vector.broadcast %cst_14 : f32 to vector<1x128xf32>
    %43 = vector.broadcast %cst_15 : f32 to vector<1x128xf32>
    %44 = arith.select %41, %42, %43 : vector<1x128xi1>, vector<1x128xf32>
    %cst_16 = arith.constant 0.000000e+00 : f32
    %45 = vector.broadcast %cst_16 : f32 to vector<1x128xf32>
    %46 = arith.subf %45, %39 : vector<1x128xf32>
    %47 = arith.mulf %46, %24 : vector<1x128xf32>
    %cst_17 = arith.constant 0.000000e+00 : f32
    %48 = vector.broadcast %cst_17 : f32 to vector<1x128xf32>
    %49 = arith.maximumf %47, %48 : vector<1x128xf32>
    %50 = math.absf %47 : vector<1x128xf32>
    %cst_18 = arith.constant 0.000000e+00 : f32
    %51 = vector.broadcast %cst_18 : f32 to vector<1x128xf32>
    %52 = arith.subf %51, %50 : vector<1x128xf32>
    %53 = math.exp %52 : vector<1x128xf32>
    %54 = math.log1p %53 : vector<1x128xf32>
    %55 = arith.addf %49, %54 : vector<1x128xf32>
    %cst_19 = arith.constant 1.000000e+02 : f32
    %56 = vector.broadcast %cst_19 : f32 to vector<1x128xf32>
    %57 = arith.minimumf %55, %56 : vector<1x128xf32>
    %c0_20 = arith.constant 0 : index
    %c0_21 = arith.constant 0 : index
    %c0_22 = arith.constant 0 : index
    %58 = vector.load %arg7[%c0_20, %c0_21, %c0_22] : memref<1x1x128xf32, #tpu.memory_space<vmem>>, vector<1x1x128xf32>
    %59 = vector.shape_cast %58 : vector<1x1x128xf32> to vector<1x128xf32>
    %60 = arith.mulf %44, %57 : vector<1x128xf32>
    %61 = arith.addf %59, %60 : vector<1x128xf32>
    %c0_23 = arith.constant 0 : index
    %c0_24 = arith.constant 0 : index
    %c0_25 = arith.constant 0 : index
    %62 = vector.load %arg7[%c0_23, %c0_24, %c0_25] : memref<1x1x128xf32, #tpu.memory_space<vmem>>, vector<1x1x128xf32>
    %63 = vector.shape_cast %62 : vector<1x1x128xf32> to vector<1x128xf32>
    %64 = vector.shape_cast %61 : vector<1x128xf32> to vector<1x1x128xf32>
    tpu.vector_store %arg7[%c0_23, %c0_24, %c0_25], %64 {strides = array<i32>} : memref<1x1x128xf32, #tpu.memory_space<vmem>>, vector<1x1x128xf32>,
    return
  }
  func.func @transform_0(%arg0: i32, %arg1: i32) -> (i32, i32) {
    %c1_i32 = arith.constant 1 : i32
    %0 = arith.muli %arg0, %c1_i32 : i32
    %1 = arith.addi %0, %arg1 : i32
    %c0_i32 = arith.constant 0 : i32
    %c0_i32_0 = arith.constant 0 : i32
    return %1, %c0_i32 : i32, i32
  }
  func.func @transform_1(%arg0: i32, %arg1: i32) -> (i32, i32) {
    %c1_i32 = arith.constant 1 : i32
    %0 = arith.muli %arg0, %c1_i32 : i32
    %1 = arith.addi %0, %arg1 : i32
    %c0_i32 = arith.constant 0 : i32
    %c0_i32_0 = arith.constant 0 : i32
    return %1, %c0_i32 : i32, i32
  }
  func.func @transform_2(%arg0: i32, %arg1: i32) -> (i32, i32) {
    %c0_i32 = arith.constant 0 : i32
    %c0_i32_0 = arith.constant 0 : i32
    %c0_i32_1 = arith.constant 0 : i32
    return %c0_i32, %c0_i32_0 : i32, i32
  }
  func.func @transform_3(%arg0: i32, %arg1: i32) -> (i32, i32) {
    %c0_i32 = arith.constant 0 : i32
    %c0_i32_0 = arith.constant 0 : i32
    %c0_i32_1 = arith.constant 0 : i32
    return %c0_i32, %c0_i32_0 : i32, i32
  }
  func.func @transform_4(%arg0: i32, %arg1: i32) -> i32 {
    %c0_i32 = arith.constant 0 : i32
    %c0_i32_0 = arith.constant 0 : i32
    return %c0_i32 : i32
  }
  func.func @transform_5(%arg0: i32, %arg1: i32) -> (i32, i32, i32) {
    %c0_i32 = arith.constant 0 : i32
    %c0_i32_0 = arith.constant 0 : i32
    %c0_i32_1 = arith.constant 0 : i32
    return %arg0, %c0_i32, %c0_i32_0 : i32, i32, i32
  }
}

</mosaic_0001>

<llo_original>
// kernel: tpu_custom_call.1
$region0: #{tpu_custom_call.1}
  #allocation0 [shape = 'u32[]', space=smem, size = 0x4, offset = 0x4, fixed_abs, tag = 'smem constant byte address 0x4 - core index']
  #allocation1 [shape = 'u32[144,128]{1,0:T(1,128)}', space=vmem, size = 0x12000, scoped, tag = 'internal scratch']
  #allocation2 [shape = 'f32[1]{0:T(128)S(6)}', space=smem, size = 0x200, scoped, tag = 'scoped memory for tpu_custom_call.1']
  %s0 = inlined_call_operand.vmem [shape: s32[256,1], index: 0, kind: input, shape index: {}]
  %s1 = inlined_call_operand.vmem [shape: s32[256,1], index: 1, kind: input, shape index: {}]
  %s2 = inlined_call_operand.vmem [shape: f32[16,32], index: 2, kind: input, shape index: {}]
  %s3 = inlined_call_operand.vmem [shape: f32[16,32], index: 3, kind: input, shape index: {}]
  %s4 = inlined_call_operand.<no memory space> [shape: f32[1], index: 4, kind: input, shape index: {}]
  %s5 = inlined_call_operand.hbm [shape: f32[2,1,128], index: 5, kind: output, shape index: {}]
  %s6 = sld [smem:[#allocation0]]
  $region57: #{tpu_custom_call.1} parent=0
    _
  %s8 = ssub.s32 1, %s6
  %s9 = scalar_select 0, %s8, %s6
  %10 = sst [smem:[#allocation2]] %s4
  $region1: #{tpu_custom_call.1} parent=0
    #allocation3 [shape = 'u8[1024]{0}', space=vmem, size = 0x400, scoped, tag = 'output window, operand 0']
    #allocation4 [shape = 's32[2]{0}', space=sflag, size = 0x8, scoped, tag = 'scoped memory for tpu_custom_call.1']
    %11 = vsyncpa [#allocation4], 0
    %s12 = scalar_lea.sflag [#allocation4], 1
    %13 = vsyncpa %s12, 0
    loop: start=0, step=1, limit=4
    $region2: #{tpu_custom_call.1} parent=1 // loop_pre_header
      _
    $region3: #{tpu_custom_call.1} parent=1 // loop_header
      %s15 = sphi 0, %s19
      %p16 = scmp.ge.s32.totalorder %s15, 4
      %s22 = sphi 0, %s34
      %s23 = sphi 0, %s30
      %s24 = sphi 0, %s22
      %s25 = sphi 0, %s23
      %s26 = sphi 0, %s24
      %s27 = sphi 0, %s25
      %s39 = sphi 0, %s41
      %s42 = sphi 0, %s39
      %s43 = sphi 0, %s42
      %s59 = sphi 0, %s43
      %s67 = sphi 0, %s69
      %s70 = sphi 0, %s67
      %s71 = sphi 0, %s70
      %s87 = sphi 0, %s71
      %s91 = sphi 0, %s91
      %s93 = sphi 0, %s91
      %s94 = sphi 0, %s93
      %s108 = sphi 0, %s94
      %s112 = sphi 0, %s112
      %s114 = sphi 0, %s112
      %s115 = sphi 0, %s114
      %s129 = sphi 0, %s115
      %s133 = sphi 0, %s133
      %s135 = sphi 0, %s133
      %s136 = sphi 0, %s135
      %s150 = sphi 0, %s136
      %s156 = sphi 0, %s158
      %s159 = sphi 0, %s156
      %s160 = sphi 0, %s159
      %s176 = sphi 0, %s160
    $region4: #{tpu_custom_call.1} parent=1 // loop_header_branch
      %18 = sbr.rel (%p16) target = $region8
    $region5: #{tpu_custom_call.1} parent=1 // loop_body
      %s20 = ssub.s32 %s15, 1
      %s21 = ssub.s32 %s15, 2
      %s28 = sadd.s32 1, %s23
      %p29 = scmp.ge.s32.totalorder %s28, 1
      %s30 = scalar_select %p29, 0, %s28
      %s31 = sadd.s32 1, %s22
      %s32 = scalar_select %p29, %s31, %s22
      %p33 = scmp.ge.s32.totalorder %s32, 2
      %s34 = scalar_select %p33, 0, %s32
      %s35 = sadd.s32 %s22, %s23
      %s36 = sadd.s32 %s34, %s30
      %s37 = ssub.s32 %s35, %s36
      %p38 = scmp.eq.s32.totalorder %s37, 0
      %s40 = sadd.s32 %s39, 1
      %s41 = scalar_select %p38, %s39, %s40
      %p44 = pneg %p38
      %p45 = scmp.eq.s32.totalorder %s15, 1
      %p46 = por %p44, %p45
      %p47 = scmp.ne.s32.totalorder %s39, %s42
      %p48 = scmp.eq.s32.totalorder %s15, 0
      %p49 = por %p47, %p48
      %p50 = scmp.ne.s32.totalorder %s39, %s42
      %p51 = scmp.eq.s32.totalorder %s20, 1
      %p52 = por %p50, %p51
      %p53 = scmp.ne.s32.totalorder %s42, %s43
      %p54 = scmp.eq.s32.totalorder %s20, 0
      %p55 = por %p53, %p54
      %p56 = scmp.ne.s32.totalorder %s42, %s43
      %p57 = scmp.eq.s32.totalorder %s21, 1
      %p58 = por %p56, %p57
      %p60 = scmp.ne.s32.totalorder %s43, %s59
      %p61 = scmp.eq.s32.totalorder %s21, 0
      %p62 = por %p60, %p61
      %s63 = sadd.s32 %s22, %s23
      %s64 = sadd.s32 %s34, %s30
      %s65 = ssub.s32 %s63, %s64
      %p66 = scmp.eq.s32.totalorder %s65, 0
      %s68 = sadd.s32 %s67, 1
      %s69 = scalar_select %p66, %s67, %s68
      %p72 = pneg %p66
      %p73 = scmp.eq.s32.totalorder %s15, 1
      %p74 = por %p72, %p73
      %p75 = scmp.ne.s32.totalorder %s67, %s70
      %p76 = scmp.eq.s32.totalorder %s15, 0
      %p77 = por %p75, %p76
      %p78 = scmp.ne.s32.totalorder %s67, %s70
      %p79 = scmp.eq.s32.totalorder %s20, 1
      %p80 = por %p78, %p79
      %p81 = scmp.ne.s32.totalorder %s70, %s71
      %p82 = scmp.eq.s32.totalorder %s20, 0
      %p83 = por %p81, %p82
      %p84 = scmp.ne.s32.totalorder %s70, %s71
      %p85 = scmp.eq.s32.totalorder %s21, 1
      %p86 = por %p84, %p85
      %p88 = scmp.ne.s32.totalorder %s71, %s87
      %p89 = scmp.eq.s32.totalorder %s21, 0
      %p90 = por %p88, %p89
      %s92 = sadd.s32 %s91, 1
      %p95 = scmp.eq.s32.totalorder %s15, 1
      %p96 = scmp.ne.s32.totalorder %s91, %s93
      %p97 = scmp.eq.s32.totalorder %s15, 0
      %p98 = por %p96, %p97
      %p99 = scmp.ne.s32.totalorder %s91, %s93
      %p100 = scmp.eq.s32.totalorder %s20, 1
      %p101 = por %p99, %p100
      %p102 = scmp.ne.s32.totalorder %s93, %s94
      %p103 = scmp.eq.s32.totalorder %s20, 0
      %p104 = por %p102, %p103
      %p105 = scmp.ne.s32.totalorder %s93, %s94
      %p106 = scmp.eq.s32.totalorder %s21, 1
      %p107 = por %p105, %p106
      %p109 = scmp.ne.s32.totalorder %s94, %s108
      %p110 = scmp.eq.s32.totalorder %s21, 0
      %p111 = por %p109, %p110
      %s113 = sadd.s32 %s112, 1
      %p116 = scmp.eq.s32.totalorder %s15, 1
      %p117 = scmp.ne.s32.totalorder %s112, %s114
      %p118 = scmp.eq.s32.totalorder %s15, 0
      %p119 = por %p117, %p118
      %p120 = scmp.ne.s32.totalorder %s112, %s114
      %p121 = scmp.eq.s32.totalorder %s20, 1
      %p122 = por %p120, %p121
      %p123 = scmp.ne.s32.totalorder %s114, %s115
      %p124 = scmp.eq.s32.totalorder %s20, 0
      %p125 = por %p123, %p124
      %p126 = scmp.ne.s32.totalorder %s114, %s115
      %p127 = scmp.eq.s32.totalorder %s21, 1
      %p128 = por %p126, %p127
      %p130 = scmp.ne.s32.totalorder %s115, %s129
      %p131 = scmp.eq.s32.totalorder %s21, 0
      %p132 = por %p130, %p131
      %s134 = sadd.s32 %s133, 1
      %p137 = scmp.eq.s32.totalorder %s15, 1
      %p138 = scmp.ne.s32.totalorder %s133, %s135
      %p139 = scmp.eq.s32.totalorder %s15, 0
      %p140 = por %p138, %p139
      %p141 = scmp.ne.s32.totalorder %s133, %s135
      %p142 = scmp.eq.s32.totalorder %s20, 1
      %p143 = por %p141, %p142
      %p144 = scmp.ne.s32.totalorder %s135, %s136
      %p145 = scmp.eq.s32.totalorder %s20, 0
      %p146 = por %p144, %p145
      %p147 = scmp.ne.s32.totalorder %s135, %s136
      %p148 = scmp.eq.s32.totalorder %s21, 1
      %p149 = por %p147, %p148
      %p151 = scmp.ne.s32.totalorder %s136, %s150
      %p152 = scmp.eq.s32.totalorder %s21, 0
      %p153 = por %p151, %p152
      %s154 = ssub.s32 %s22, %s34
      %p155 = scmp.eq.s32.totalorder %s154, 0
      %s157 = sadd.s32 %s156, 1
      %s158 = scalar_select %p155, %s156, %s157
      %p161 = pneg %p155
      %p162 = scmp.eq.s32.totalorder %s15, 1
      %p163 = por %p161, %p162
      %p164 = scmp.ne.s32.totalorder %s156, %s159
      %p165 = scmp.eq.s32.totalorder %s15, 0
      %p166 = por %p164, %p165
      %p167 = scmp.ne.s32.totalorder %s156, %s159
      %p168 = scmp.eq.s32.totalorder %s20, 1
      %p169 = por %p167, %p168
      %p170 = scmp.ne.s32.totalorder %s159, %s160
      %p171 = scmp.eq.s32.totalorder %s20, 0
      %p172 = por %p170, %p171
      %p173 = scmp.ne.s32.totalorder %s159, %s160
      %p174 = scmp.eq.s32.totalorder %s21, 1
      %p175 = por %p173, %p174
      %p177 = scmp.ne.s32.totalorder %s160, %s176
      %p178 = scmp.eq.s32.totalorder %s21, 0
      %p179 = por %p177, %p178
      %p180 = scmp.le.s32.totalorder 1, %s15
      %p181 = scmp.lt.s32.totalorder %s15, 3
      %p182 = pnand %p180, %p181
      %p183 = pneg %p182
      // Predicated region
      $region9: #{tpu_custom_call.1} parent=5 // pred_check
        _
      $region10: #{tpu_custom_call.1} parent=5 // pred_check_branch
        %185 = sbr.rel (%p182) target = $region12
      $region11: #{tpu_custom_call.1} parent=5 // pred_region
        %s186 = ssub.s32 %s15, 1
        // Predicated region
        $region13: #{tpu_custom_call.1} parent=11 // pred_check
          %p187 = pneg %p104
        $region14: #{tpu_custom_call.1} parent=11 // pred_check_branch
          %189 = sbr.rel (%p187) target = $region16
        $region15: #{tpu_custom_call.1} parent=11 // pred_region
          _
        $region16: #{tpu_custom_call.1} parent=11 // pred_fallthru
          _
        // Predicated region
        $region17: #{tpu_custom_call.1} parent=11 // pred_check
          %p190 = pneg %p125
        $region18: #{tpu_custom_call.1} parent=11 // pred_check_branch
          %192 = sbr.rel (%p190) target = $region20
        $region19: #{tpu_custom_call.1} parent=11 // pred_region
          _
        $region20: #{tpu_custom_call.1} parent=11 // pred_fallthru
          _
        // Predicated region
        $region21: #{tpu_custom_call.1} parent=11 // pred_check
          %p193 = pneg %p146
        $region22: #{tpu_custom_call.1} parent=11 // pred_check_branch
          %195 = sbr.rel (%p193) target = $region24
        $region23: #{tpu_custom_call.1} parent=11 // pred_region
          _
        $region24: #{tpu_custom_call.1} parent=11 // pred_fallthru
          _
      $region12: #{tpu_custom_call.1} parent=5 // pred_fallthru
        _
      %p196 = scmp.lt.s32.totalorder %s15, 2
      // Predicated region
      $region25: #{tpu_custom_call.1} parent=5 // pred_check
        %p197 = pneg %p196
      $region26: #{tpu_custom_call.1} parent=5 // pred_check_branch
        %199 = sbr.rel (%p197) target = $region28
      $region27: #{tpu_custom_call.1} parent=5 // pred_region
        // Predicated region
        $region29: #{tpu_custom_call.1} parent=27 // pred_check
          %p200 = pneg %p49
        $region30: #{tpu_custom_call.1} parent=27 // pred_check_branch
          %202 = sbr.rel (%p200) target = $region32
        $region31: #{tpu_custom_call.1} parent=27 // pred_region
          %s203 = sadd.s32 %s22, %s23
          %s204 = smul.u32 16, %s203
          %p205 = scmp.lt.s32.totalorder %s204, 31
          %s206 = scalar_select %p205, %s204, 31
          %s207 = smul.addr %s206, 8
          %s208 = scalar_lea.vmem %s0, %s207
          %s209 = sadd.s32 %s22, %s23
          %s210 = smul.u32 16, %s209
        $region32: #{tpu_custom_call.1} parent=27 // pred_fallthru
          _
        // Predicated region
        $region33: #{tpu_custom_call.1} parent=27 // pred_check
          %p211 = pneg %p77
        $region34: #{tpu_custom_call.1} parent=27 // pred_check_branch
          %213 = sbr.rel (%p211) target = $region36
        $region35: #{tpu_custom_call.1} parent=27 // pred_region
          %s214 = sadd.s32 %s22, %s23
          %s215 = smul.u32 16, %s214
          %p216 = scmp.lt.s32.totalorder %s215, 31
          %s217 = scalar_select %p216, %s215, 31
          %s218 = smul.addr %s217, 8
          %s219 = scalar_lea.vmem %s1, %s218
          %s220 = sadd.s32 %s22, %s23
          %s221 = smul.u32 16, %s220
        $region36: #{tpu_custom_call.1} parent=27 // pred_fallthru
          _
      $region28: #{tpu_custom_call.1} parent=5 // pred_fallthru
        _
      %p222 = scmp.le.s32.totalorder 1, %s15
      %p223 = scmp.lt.s32.totalorder %s15, 3
      %p224 = pnand %p222, %p223
      %p225 = pneg %p224
      // Predicated region
      $region37: #{tpu_custom_call.1} parent=5 // pred_check
        _
      $region38: #{tpu_custom_call.1} parent=5 // pred_check_branch
        %227 = sbr.rel (%p224) target = $region40
      $region39: #{tpu_custom_call.1} parent=5 // pred_region
        %s228 = ssub.s32 %s15, 1
        %s229 = sadd.s32 %s24, %s25
        %s230 = smul.u32 16, %s229
        %p231 = scmp.lt.s32.totalorder %s230, 31
        %s232 = scalar_select %p231, %s230, 31
        %s233 = smul.addr %s232, 8
        %s234 = scalar_lea.vmem %s0, %s233
        %p235 = pneg %p55
        %p236 = pneg %p52
        %s237 = sadd.s32 %s24, %s25
        %s238 = smul.u32 16, %s237
        %p239 = scmp.lt.s32.totalorder %s238, 31
        %s240 = scalar_select %p239, %s238, 31
        %s241 = smul.addr %s240, 8
        %s242 = scalar_lea.vmem %s1, %s241
        %p243 = pneg %p83
        %p244 = pneg %p80
        %p245 = pneg %p104
        %p246 = pneg %p101
        %p247 = pneg %p125
        %p248 = pneg %p122
        %p249 = pneg %p146
        %p250 = pneg %p143
        %p251 = pneg %p172
        %p252 = pneg %p169
        %s253 = sand.u32 %s159, 1
        %s254 = scalar_lea.sflag [#allocation4], %s253
        %s255 = sand.u32 %s159, 1
        %s256 = scalar_lea.vmem [#allocation3], %s255
        %s257 = sadd.s32 %s24, %s25
        %s258 = smul.u32 16, %s257
        %p259 = scmp.lt.s32.totalorder %s258, 31
        %s260 = scalar_select %p259, %s258, 31
        %s261 = smul.addr %s260, 8
        %s262 = scalar_lea.vmem %s0, %s261
        %s263 = sadd.s32 %s24, %s25
        %s264 = smul.u32 16, %s263
        %s265 = sadd.s32 %s24, %s25
        %s266 = smul.u32 16, %s265
        %p267 = scmp.lt.s32.totalorder %s266, 31
        %s268 = scalar_select %p267, %s266, 31
        %s269 = smul.addr %s268, 8
        %s270 = scalar_lea.vmem %s1, %s269
        %s271 = sadd.s32 %s24, %s25
        %s272 = smul.u32 16, %s271
        %p273 = scmp.eq.s32.totalorder %s25, 0
        // Predicated region
        $region41: #{tpu_custom_call.1} parent=39 // pred_check
          %p274 = pneg %p273
        $region42: #{tpu_custom_call.1} parent=39 // pred_check_branch
          %276 = sbr.rel (%p274) target = $region44
        $region43: #{tpu_custom_call.1} parent=39 // pred_region
          %277 = vst [vmem:[%s256] sm:$0x1] 0.0
        $region44: #{tpu_custom_call.1} parent=39 // pred_fallthru
          _
        %v278 = vld [vmem:[%s262] sm:$0xff]
        %v279 = vld [vmem:[%s262 + $0x8] sm:$0xff]
        %v280 = vld [vmem:[%s262 + $0x10] sm:$0xff]
        %v281 = vld [vmem:[%s262 + $0x18] sm:$0xff]
        %v282 = vld [vmem:[%s262 + $0x20] sm:$0xff]
        %v283 = vld [vmem:[%s262 + $0x28] sm:$0xff]
        %v284 = vld [vmem:[%s262 + $0x30] sm:$0xff]
        %v285 = vld [vmem:[%s262 + $0x38] sm:$0xff]
        %v286 = vld [vmem:[%s262 + $0x40] sm:$0xff]
        %v287 = vld [vmem:[%s262 + $0x48] sm:$0xff]
        %v288 = vld [vmem:[%s262 + $0x50] sm:$0xff]
        %v289 = vld [vmem:[%s262 + $0x58] sm:$0xff]
        %v290 = vld [vmem:[%s262 + $0x60] sm:$0xff]
        %v291 = vld [vmem:[%s262 + $0x68] sm:$0xff]
        %v292 = vld [vmem:[%s262 + $0x70] sm:$0xff]
        %v293 = vld [vmem:[%s262 + $0x78] sm:$0xff]
        %v294 = vld [vmem:[%s270] sm:$0xff]
        %v295 = vld [vmem:[%s270 + $0x8] sm:$0xff]
        %v296 = vld [vmem:[%s270 + $0x10] sm:$0xff]
        %v297 = vld [vmem:[%s270 + $0x18] sm:$0xff]
        %v298 = vld [vmem:[%s270 + $0x20] sm:$0xff]
        %v299 = vld [vmem:[%s270 + $0x28] sm:$0xff]
        %v300 = vld [vmem:[%s270 + $0x30] sm:$0xff]
        %v301 = vld [vmem:[%s270 + $0x38] sm:$0xff]
        %v302 = vld [vmem:[%s270 + $0x40] sm:$0xff]
        %v303 = vld [vmem:[%s270 + $0x48] sm:$0xff]
        %v304 = vld [vmem:[%s270 + $0x50] sm:$0xff]
        %v305 = vld [vmem:[%s270 + $0x58] sm:$0xff]
        %v306 = vld [vmem:[%s270 + $0x60] sm:$0xff]
        %v307 = vld [vmem:[%s270 + $0x68] sm:$0xff]
        %v308 = vld [vmem:[%s270 + $0x70] sm:$0xff]
        %v309 = vld [vmem:[%s270 + $0x78] sm:$0xff]
        %v310 = vlaneseq
        %v311 = vand.u32 %v310, 127
        %312 = vset.pattern.permute.xlu0 0
        %313 = vperm.xlu0 %312, %v278
        %v314 = vpop.permute.xlu0 %313
        %315 = vset.pattern.permute.xlu0 0
        %316 = vperm.xlu0 %315, %v279
        %v317 = vpop.permute.xlu0 %316
        %318 = vset.pattern.permute.xlu0 0
        %319 = vperm.xlu0 %318, %v280
        %v320 = vpop.permute.xlu0 %319
        %321 = vset.pattern.permute.xlu0 0
        %322 = vperm.xlu0 %321, %v281
        %v323 = vpop.permute.xlu0 %322
        %324 = vset.pattern.permute.xlu0 0
        %325 = vperm.xlu0 %324, %v282
        %v326 = vpop.permute.xlu0 %325
        %327 = vset.pattern.permute.xlu0 0
        %328 = vperm.xlu0 %327, %v283
        %v329 = vpop.permute.xlu0 %328
        %330 = vset.pattern.permute.xlu0 0
        %331 = vperm.xlu0 %330, %v284
        %v332 = vpop.permute.xlu0 %331
        %333 = vset.pattern.permute.xlu0 0
        %334 = vperm.xlu0 %333, %v285
        %v335 = vpop.permute.xlu0 %334
        %336 = vset.pattern.permute.xlu0 0
        %337 = vperm.xlu0 %336, %v286
        %v338 = vpop.permute.xlu0 %337
        %339 = vset.pattern.permute.xlu0 0
        %340 = vperm.xlu0 %339, %v287
        %v341 = vpop.permute.xlu0 %340
        %342 = vset.pattern.permute.xlu0 0
        %343 = vperm.xlu0 %342, %v288
        %v344 = vpop.permute.xlu0 %343
        %345 = vset.pattern.permute.xlu0 0
        %346 = vperm.xlu0 %345, %v289
        %v347 = vpop.permute.xlu0 %346
        %348 = vset.pattern.permute.xlu0 0
        %349 = vperm.xlu0 %348, %v290
        %v350 = vpop.permute.xlu0 %349
        %351 = vset.pattern.permute.xlu0 0
        %352 = vperm.xlu0 %351, %v291
        %v353 = vpop.permute.xlu0 %352
        %354 = vset.pattern.permute.xlu0 0
        %355 = vperm.xlu0 %354, %v292
        %v356 = vpop.permute.xlu0 %355
        %357 = vset.pattern.permute.xlu0 0
        %358 = vperm.xlu0 %357, %v293
        %v359 = vpop.permute.xlu0 %358
        %vm360 = vcmp.eq.s32.totalorder %v311, %v314
        %vm361 = vcmp.eq.s32.totalorder %v311, %v317
        %vm362 = vcmp.eq.s32.totalorder %v311, %v320
        %vm363 = vcmp.eq.s32.totalorder %v311, %v323
        %vm364 = vcmp.eq.s32.totalorder %v311, %v326
        %vm365 = vcmp.eq.s32.totalorder %v311, %v329
        %vm366 = vcmp.eq.s32.totalorder %v311, %v332
        %vm367 = vcmp.eq.s32.totalorder %v311, %v335
        %vm368 = vcmp.eq.s32.totalorder %v311, %v338
        %vm369 = vcmp.eq.s32.totalorder %v311, %v341
        %vm370 = vcmp.eq.s32.totalorder %v311, %v344
        %vm371 = vcmp.eq.s32.totalorder %v311, %v347
        %vm372 = vcmp.eq.s32.totalorder %v311, %v350
        %vm373 = vcmp.eq.s32.totalorder %v311, %v353
        %vm374 = vcmp.eq.s32.totalorder %v311, %v356
        %vm375 = vcmp.eq.s32.totalorder %v311, %v359
        %v376 = vsel %vm360, 1, 0
        %v377 = vsel %vm361, 1, 0
        %v378 = vsel %vm362, 1, 0
        %v379 = vsel %vm363, 1, 0
        %v380 = vsel %vm364, 1, 0
        %v381 = vsel %vm365, 1, 0
        %v382 = vsel %vm366, 1, 0
        %v383 = vsel %vm367, 1, 0
        %v384 = vsel %vm368, 1, 0
        %v385 = vsel %vm369, 1, 0
        %v386 = vsel %vm370, 1, 0
        %v387 = vsel %vm371, 1, 0
        %v388 = vsel %vm372, 1, 0
        %v389 = vsel %vm373, 1, 0
        %v390 = vsel %vm374, 1, 0
        %v391 = vsel %vm375, 1, 0
        %v392 = vcvt.s32.f32 %v376
        %v393 = vcvt.s32.f32 %v377
        %v394 = vcvt.s32.f32 %v378
        %v395 = vcvt.s32.f32 %v379
        %v396 = vcvt.s32.f32 %v380
        %v397 = vcvt.s32.f32 %v381
        %v398 = vcvt.s32.f32 %v382
        %v399 = vcvt.s32.f32 %v383
        %v400 = vcvt.s32.f32 %v384
        %v401 = vcvt.s32.f32 %v385
        %v402 = vcvt.s32.f32 %v386
        %v403 = vcvt.s32.f32 %v387
        %v404 = vcvt.s32.f32 %v388
        %v405 = vcvt.s32.f32 %v389
        %v406 = vcvt.s32.f32 %v390
        %v407 = vcvt.s32.f32 %v391
        %408 = vset.pattern.permute.xlu0 0
        %409 = vperm.xlu0 %408, %v294
        %v410 = vpop.permute.xlu0 %409
        %411 = vset.pattern.permute.xlu0 0
        %412 = vperm.xlu0 %411, %v295
        %v413 = vpop.permute.xlu0 %412
        %414 = vset.pattern.permute.xlu0 0
        %415 = vperm.xlu0 %414, %v296
        %v416 = vpop.permute.xlu0 %415
        %417 = vset.pattern.permute.xlu0 0
        %418 = vperm.xlu0 %417, %v297
        %v419 = vpop.permute.xlu0 %418
        %420 = vset.pattern.permute.xlu0 0
        %421 = vperm.xlu0 %420, %v298
        %v422 = vpop.permute.xlu0 %421
        %423 = vset.pattern.permute.xlu0 0
        %424 = vperm.xlu0 %423, %v299
        %v425 = vpop.permute.xlu0 %424
        %426 = vset.pattern.permute.xlu0 0
        %427 = vperm.xlu0 %426, %v300
        %v428 = vpop.permute.xlu0 %427
        %429 = vset.pattern.permute.xlu0 0
        %430 = vperm.xlu0 %429, %v301
        %v431 = vpop.permute.xlu0 %430
        %432 = vset.pattern.permute.xlu0 0
        %433 = vperm.xlu0 %432, %v302
        %v434 = vpop.permute.xlu0 %433
        %435 = vset.pattern.permute.xlu0 0
        %436 = vperm.xlu0 %435, %v303
        %v437 = vpop.permute.xlu0 %436
        %438 = vset.pattern.permute.xlu0 0
        %439 = vperm.xlu0 %438, %v304
        %v440 = vpop.permute.xlu0 %439
        %441 = vset.pattern.permute.xlu0 0
        %442 = vperm.xlu0 %441, %v305
        %v443 = vpop.permute.xlu0 %442
        %444 = vset.pattern.permute.xlu0 0
        %445 = vperm.xlu0 %444, %v306
        %v446 = vpop.permute.xlu0 %445
        %447 = vset.pattern.permute.xlu0 0
        %448 = vperm.xlu0 %447, %v307
        %v449 = vpop.permute.xlu0 %448
        %450 = vset.pattern.permute.xlu0 0
        %451 = vperm.xlu0 %450, %v308
        %v452 = vpop.permute.xlu0 %451
        %453 = vset.pattern.permute.xlu0 0
        %454 = vperm.xlu0 %453, %v309
        %v455 = vpop.permute.xlu0 %454
        %vm456 = vcmp.eq.s32.totalorder %v311, %v410
        %vm457 = vcmp.eq.s32.totalorder %v311, %v413
        %vm458 = vcmp.eq.s32.totalorder %v311, %v416
        %vm459 = vcmp.eq.s32.totalorder %v311, %v419
        %vm460 = vcmp.eq.s32.totalorder %v311, %v422
        %vm461 = vcmp.eq.s32.totalorder %v311, %v425
        %vm462 = vcmp.eq.s32.totalorder %v311, %v428
        %vm463 = vcmp.eq.s32.totalorder %v311, %v431
        %vm464 = vcmp.eq.s32.totalorder %v311, %v434
        %vm465 = vcmp.eq.s32.totalorder %v311, %v437
        %vm466 = vcmp.eq.s32.totalorder %v311, %v440
        %vm467 = vcmp.eq.s32.totalorder %v311, %v443
        %vm468 = vcmp.eq.s32.totalorder %v311, %v446
        %vm469 = vcmp.eq.s32.totalorder %v311, %v449
        %vm470 = vcmp.eq.s32.totalorder %v311, %v452
        %vm471 = vcmp.eq.s32.totalorder %v311, %v455
        %v472 = vsel %vm456, 1, 0
        %v473 = vsel %vm457, 1, 0
        %v474 = vsel %vm458, 1, 0
        %v475 = vsel %vm459, 1, 0
        %v476 = vsel %vm460, 1, 0
        %v477 = vsel %vm461, 1, 0
        %v478 = vsel %vm462, 1, 0
        %v479 = vsel %vm463, 1, 0
        %v480 = vsel %vm464, 1, 0
        %v481 = vsel %vm465, 1, 0
        %v482 = vsel %vm466, 1, 0
        %v483 = vsel %vm467, 1, 0
        %v484 = vsel %vm468, 1, 0
        %v485 = vsel %vm469, 1, 0
        %v486 = vsel %vm470, 1, 0
        %v487 = vsel %vm471, 1, 0
        %v488 = vcvt.s32.f32 %v472
        %v489 = vcvt.s32.f32 %v473
        %v490 = vcvt.s32.f32 %v474
        %v491 = vcvt.s32.f32 %v475
        %v492 = vcvt.s32.f32 %v476
        %v493 = vcvt.s32.f32 %v477
        %v494 = vcvt.s32.f32 %v478
        %v495 = vcvt.s32.f32 %v479
        %v496 = vcvt.s32.f32 %v480
        %v497 = vcvt.s32.f32 %v481
        %v498 = vcvt.s32.f32 %v482
        %v499 = vcvt.s32.f32 %v483
        %v500 = vcvt.s32.f32 %v484
        %v501 = vcvt.s32.f32 %v485
        %v502 = vcvt.s32.f32 %v486
        %v503 = vcvt.s32.f32 %v487
        %v504 = vld [vmem:[%s2] sm:$0xff]
        %v505 = vld [vmem:[%s2 + $0x8] sm:$0xff]
        %vm506 = vcmask 130048
        %v508 = vsel %vm506, %v392, 0
        %v511 = vsel %vm506, %v393, 0
        %v514 = vsel %vm506, %v394, 0
        %v517 = vsel %vm506, %v395, 0
        %v520 = vsel %vm506, %v396, 0
        %v523 = vsel %vm506, %v397, 0
        %v526 = vsel %vm506, %v398, 0
        %v529 = vsel %vm506, %v399, 0
        %v532 = vsel %vm506, %v400, 0
        %v535 = vsel %vm506, %v401, 0
        %v538 = vsel %vm506, %v402, 0
        %v541 = vsel %vm506, %v403, 0
        %v544 = vsel %vm506, %v404, 0
        %v547 = vsel %vm506, %v405, 0
        %v550 = vsel %vm506, %v406, 0
        %v553 = vsel %vm506, %v407, 0
        %555 = vmatprep.subr.mxu0 0.0
        %556 = vmatpush1.msra.mxu0 %v504
        %557 = vmatprep.subr.mxu0 0.0
        %558 = vmatpush1.msra.mxu0 %v505
        %559 = vmatprep.subr.mxu0 0.0
        %560 = vmatpush1.msra.mxu0 0.0
        %561 = vmatprep.subr.mxu0 0.0
        %562 = vmatpush1.msra.mxu0 0.0
        %563 = vmatprep.subr.mxu0 0.0
        %564 = vmatpush1.msra.mxu0 0.0
        %565 = vmatprep.subr.mxu0 0.0
        %566 = vmatpush1.msra.mxu0 0.0
        %567 = vmatprep.subr.mxu0 0.0
        %568 = vmatpush1.msra.mxu0 0.0
        %569 = vmatprep.subr.mxu0 0.0
        %570 = vmatpush1.msra.mxu0 0.0
        %571 = vmatprep.subr.mxu0 0.0
        %572 = vmatpush1.msra.mxu0 0.0
        %573 = vmatprep.subr.mxu0 0.0
        %574 = vmatpush1.msra.mxu0 0.0
        %575 = vmatprep.subr.mxu0 0.0
        %576 = vmatpush1.msra.mxu0 0.0
        %577 = vmatprep.subr.mxu0 0.0
        %578 = vmatpush1.msra.mxu0 0.0
        %579 = vmatprep.subr.mxu0 0.0
        %580 = vmatpush1.msra.mxu0 0.0
        %581 = vmatprep.subr.mxu0 0.0
        %582 = vmatpush1.msra.mxu0 0.0
        %583 = vmatprep.subr.mxu0 0.0
        %584 = vmatpush1.msra.mxu0 0.0
        %585 = vmatprep.subr.mxu0 0.0
        %586 = vmatpush1.msra.mxu0 0.0
        %587 = vmatprep.subr.mxu0 0.0
        %588 = vmatpush1.msra.mxu0 0.0
        %589 = vmatprep.subr.mxu0 0.0
        %590 = vmatpush1.msra.mxu0 0.0
        %591 = vmatprep.subr.mxu0 0.0
        %592 = vmatpush1.msra.mxu0 0.0
        %593 = vmatprep.subr.mxu0 0.0
        %594 = vmatpush1.msra.mxu0 0.0
        %595 = vmatprep.subr.mxu0 0.0
        %596 = vmatpush1.msra.mxu0 0.0
        %597 = vmatprep.subr.mxu0 0.0
        %598 = vmatpush1.msra.mxu0 0.0
        %599 = vmatprep.subr.mxu0 0.0
        %600 = vmatpush1.msra.mxu0 0.0
        %601 = vmatprep.subr.mxu0 0.0
        %602 = vmatpush1.msra.mxu0 0.0
        %603 = vmatprep.subr.mxu0 0.0
        %604 = vmatpush1.msra.mxu0 0.0
        %605 = vmatprep.subr.mxu0 0.0
        %606 = vmatpush1.msra.mxu0 0.0
        %607 = vmatprep.subr.mxu0 0.0
        %608 = vmatpush1.msra.mxu0 0.0
        %609 = vmatprep.subr.mxu0 0.0
        %610 = vmatpush1.msra.mxu0 0.0
        %611 = vmatprep.subr.mxu0 0.0
        %612 = vmatpush1.msra.mxu0 0.0
        %613 = vmatprep.subr.mxu0 0.0
        %614 = vmatpush1.msra.mxu0 0.0
        %615 = vmatprep.subr.mxu0 0.0
        %616 = vmatpush1.msra.mxu0 0.0
        %617 = vmatprep.subr.mxu0 0.0
        %618 = vmatpush1.msra.mxu0 0.0
        %619 = vmatprep.mubr.f32.mxu0 0.0
        %620 = vmatmul.mubr.f32.gmra.mrb[0].mxu0 %v508
        %v621 = vpop.f32.mrb[0].mxu0
        %v622 = vadd.f32 0.0, %v621
        %v623 = vpop.f32.mrb[0].mxu0
        %624 = vmatprep.mubr.f32.mxu0 0.0
        %625 = vmatmul.mubr.f32.gmra.mrb[0].mxu0 %v511
        %v626 = vpop.f32.mrb[0].mxu0
        %v627 = vadd.f32 0.0, %v626
        %v628 = vpop.f32.mrb[0].mxu0
        %629 = vmatprep.mubr.f32.mxu0 0.0
        %630 = vmatmul.mubr.f32.gmra.mrb[0].mxu0 %v514
        %v631 = vpop.f32.mrb[0].mxu0
        %v632 = vadd.f32 0.0, %v631
        %v633 = vpop.f32.mrb[0].mxu0
        %634 = vmatprep.mubr.f32.mxu0 0.0
        %635 = vmatmul.mubr.f32.gmra.mrb[0].mxu0 %v517
        %v636 = vpop.f32.mrb[0].mxu0
        %v637 = vadd.f32 0.0, %v636
        %v638 = vpop.f32.mrb[0].mxu0
        %639 = vmatprep.mubr.f32.mxu0 0.0
        %640 = vmatmul.mubr.f32.gmra.mrb[0].mxu0 %v520
        %v641 = vpop.f32.mrb[0].mxu0
        %v642 = vadd.f32 0.0, %v641
        %v643 = vpop.f32.mrb[0].mxu0
        %644 = vmatprep.mubr.f32.mxu0 0.0
        %645 = vmatmul.mubr.f32.gmra.mrb[0].mxu0 %v523
        %v646 = vpop.f32.mrb[0].mxu0
        %v647 = vadd.f32 0.0, %v646
        %v648 = vpop.f32.mrb[0].mxu0
        %649 = vmatprep.mubr.f32.mxu0 0.0
        %650 = vmatmul.mubr.f32.gmra.mrb[0].mxu0 %v526
        %v651 = vpop.f32.mrb[0].mxu0
        %v652 = vadd.f32 0.0, %v651
        %v653 = vpop.f32.mrb[0].mxu0
        %654 = vmatprep.mubr.f32.mxu0 0.0
        %655 = vmatmul.mubr.f32.gmra.mrb[0].mxu0 %v529
        %v656 = vpop.f32.mrb[0].mxu0
        %v657 = vadd.f32 0.0, %v656
        %v658 = vpop.f32.mrb[0].mxu0
        %659 = vmatprep.mubr.f32.mxu0 0.0
        %660 = vmatmul.mubr.f32.gmra.mrb[0].mxu0 %v532
        %v661 = vpop.f32.mrb[0].mxu0
        %v662 = vadd.f32 0.0, %v661
        %v663 = vpop.f32.mrb[0].mxu0
        %664 = vmatprep.mubr.f32.mxu0 0.0
        %665 = vmatmul.mubr.f32.gmra.mrb[0].mxu0 %v535
        %v666 = vpop.f32.mrb[0].mxu0
        %v667 = vadd.f32 0.0, %v666
        %v668 = vpop.f32.mrb[0].mxu0
        %669 = vmatprep.mubr.f32.mxu0 0.0
        %670 = vmatmul.mubr.f32.gmra.mrb[0].mxu0 %v538
        %v671 = vpop.f32.mrb[0].mxu0
        %v672 = vadd.f32 0.0, %v671
        %v673 = vpop.f32.mrb[0].mxu0
        %674 = vmatprep.mubr.f32.mxu0 0.0
        %675 = vmatmul.mubr.f32.gmra.mrb[0].mxu0 %v541
        %v676 = vpop.f32.mrb[0].mxu0
        %v677 = vadd.f32 0.0, %v676
        %v678 = vpop.f32.mrb[0].mxu0
        %679 = vmatprep.mubr.f32.mxu0 0.0
        %680 = vmatmul.mubr.f32.gmra.mrb[0].mxu0 %v544
        %v681 = vpop.f32.mrb[0].mxu0
        %v682 = vadd.f32 0.0, %v681
        %v683 = vpop.f32.mrb[0].mxu0
        %684 = vmatprep.mubr.f32.mxu0 0.0
        %685 = vmatmul.mubr.f32.gmra.mrb[0].mxu0 %v547
        %v686 = vpop.f32.mrb[0].mxu0
        %v687 = vadd.f32 0.0, %v686
        %v688 = vpop.f32.mrb[0].mxu0
        %689 = vmatprep.mubr.f32.mxu0 0.0
        %690 = vmatmul.mubr.f32.gmra.mrb[0].mxu0 %v550
        %v691 = vpop.f32.mrb[0].mxu0
        %v692 = vadd.f32 0.0, %v691
        %v693 = vpop.f32.mrb[0].mxu0
        %694 = vmatprep.mubr.f32.mxu0 0.0
        %695 = vmatmul.mubr.f32.gmra.mrb[0].mxu0 %v553
        %v696 = vpop.f32.mrb[0].mxu0
        %v697 = vadd.f32 0.0, %v696
        %v698 = vpop.f32.mrb[0].mxu0
        %699 = vdwg.mxu0
        %v700 = vld [vmem:[%s3] sm:$0xff]
        %v701 = vld [vmem:[%s3 + $0x8] sm:$0xff]
        %v703 = vsel %vm506, %v488, 0
        %v706 = vsel %vm506, %v489, 0
        %v709 = vsel %vm506, %v490, 0
        %v712 = vsel %vm506, %v491, 0
        %v715 = vsel %vm506, %v492, 0
        %v718 = vsel %vm506, %v493, 0
        %v721 = vsel %vm506, %v494, 0
        %v724 = vsel %vm506, %v495, 0
        %v727 = vsel %vm506, %v496, 0
        %v730 = vsel %vm506, %v497, 0
        %v733 = vsel %vm506, %v498, 0
        %v736 = vsel %vm506, %v499, 0
        %v739 = vsel %vm506, %v500, 0
        %v742 = vsel %vm506, %v501, 0
        %v745 = vsel %vm506, %v502, 0
        %v748 = vsel %vm506, %v503, 0
        %750 = vmatprep.subr.mxu0 0.0
        %751 = vmatpush1.msra.mxu0 %v700
        %752 = vmatprep.subr.mxu0 0.0
        %753 = vmatpush1.msra.mxu0 %v701
        %754 = vmatprep.subr.mxu0 0.0
        %755 = vmatpush1.msra.mxu0 0.0
        %756 = vmatprep.subr.mxu0 0.0
        %757 = vmatpush1.msra.mxu0 0.0
        %758 = vmatprep.subr.mxu0 0.0
        %759 = vmatpush1.msra.mxu0 0.0
        %760 = vmatprep.subr.mxu0 0.0
        %761 = vmatpush1.msra.mxu0 0.0
        %762 = vmatprep.subr.mxu0 0.0
        %763 = vmatpush1.msra.mxu0 0.0
        %764 = vmatprep.subr.mxu0 0.0
        %765 = vmatpush1.msra.mxu0 0.0
        %766 = vmatprep.subr.mxu0 0.0
        %767 = vmatpush1.msra.mxu0 0.0
        %768 = vmatprep.subr.mxu0 0.0
        %769 = vmatpush1.msra.mxu0 0.0
        %770 = vmatprep.subr.mxu0 0.0
        %771 = vmatpush1.msra.mxu0 0.0
        %772 = vmatprep.subr.mxu0 0.0
        %773 = vmatpush1.msra.mxu0 0.0
        %774 = vmatprep.subr.mxu0 0.0
        %775 = vmatpush1.msra.mxu0 0.0
        %776 = vmatprep.subr.mxu0 0.0
        %777 = vmatpush1.msra.mxu0 0.0
        %778 = vmatprep.subr.mxu0 0.0
        %779 = vmatpush1.msra.mxu0 0.0
        %780 = vmatprep.subr.mxu0 0.0
        %781 = vmatpush1.msra.mxu0 0.0
        %782 = vmatprep.subr.mxu0 0.0
        %783 = vmatpush1.msra.mxu0 0.0
        %784 = vmatprep.subr.mxu0 0.0
        %785 = vmatpush1.msra.mxu0 0.0
        %786 = vmatprep.subr.mxu0 0.0
        %787 = vmatpush1.msra.mxu0 0.0
        %788 = vmatprep.subr.mxu0 0.0
        %789 = vmatpush1.msra.mxu0 0.0
        %790 = vmatprep.subr.mxu0 0.0
        %791 = vmatpush1.msra.mxu0 0.0
        %792 = vmatprep.subr.mxu0 0.0
        %793 = vmatpush1.msra.mxu0 0.0
        %794 = vmatprep.subr.mxu0 0.0
        %795 = vmatpush1.msra.mxu0 0.0
        %796 = vmatprep.subr.mxu0 0.0
        %797 = vmatpush1.msra.mxu0 0.0
        %798 = vmatprep.subr.mxu0 0.0
        %799 = vmatpush1.msra.mxu0 0.0
        %800 = vmatprep.subr.mxu0 0.0
        %801 = vmatpush1.msra.mxu0 0.0
        %802 = vmatprep.subr.mxu0 0.0
        %803 = vmatpush1.msra.mxu0 0.0
        %804 = vmatprep.subr.mxu0 0.0
        %805 = vmatpush1.msra.mxu0 0.0
        %806 = vmatprep.subr.mxu0 0.0
        %807 = vmatpush1.msra.mxu0 0.0
        %808 = vmatprep.subr.mxu0 0.0
        %809 = vmatpush1.msra.mxu0 0.0
        %810 = vmatprep.subr.mxu0 0.0
        %811 = vmatpush1.msra.mxu0 0.0
        %812 = vmatprep.subr.mxu0 0.0
        %813 = vmatpush1.msra.mxu0 0.0
        %814 = vmatprep.mubr.f32.mxu0 0.0
        %815 = vmatmul.mubr.f32.gmra.mrb[0].mxu0 %v703
        %v816 = vpop.f32.mrb[0].mxu0
        %v817 = vadd.f32 0.0, %v816
        %v818 = vpop.f32.mrb[0].mxu0
        %819 = vmatprep.mubr.f32.mxu0 0.0
        %820 = vmatmul.mubr.f32.gmra.mrb[0].mxu0 %v706
        %v821 = vpop.f32.mrb[0].mxu0
        %v822 = vadd.f32 0.0, %v821
        %v823 = vpop.f32.mrb[0].mxu0
        %824 = vmatprep.mubr.f32.mxu0 0.0
        %825 = vmatmul.mubr.f32.gmra.mrb[0].mxu0 %v709
        %v826 = vpop.f32.mrb[0].mxu0
        %v827 = vadd.f32 0.0, %v826
        %v828 = vpop.f32.mrb[0].mxu0
        %829 = vmatprep.mubr.f32.mxu0 0.0
        %830 = vmatmul.mubr.f32.gmra.mrb[0].mxu0 %v712
        %v831 = vpop.f32.mrb[0].mxu0
        %v832 = vadd.f32 0.0, %v831
        %v833 = vpop.f32.mrb[0].mxu0
        %834 = vmatprep.mubr.f32.mxu0 0.0
        %835 = vmatmul.mubr.f32.gmra.mrb[0].mxu0 %v715
        %v836 = vpop.f32.mrb[0].mxu0
        %v837 = vadd.f32 0.0, %v836
        %v838 = vpop.f32.mrb[0].mxu0
        %839 = vmatprep.mubr.f32.mxu0 0.0
        %840 = vmatmul.mubr.f32.gmra.mrb[0].mxu0 %v718
        %v841 = vpop.f32.mrb[0].mxu0
        %v842 = vadd.f32 0.0, %v841
        %v843 = vpop.f32.mrb[0].mxu0
        %844 = vmatprep.mubr.f32.mxu0 0.0
        %845 = vmatmul.mubr.f32.gmra.mrb[0].mxu0 %v721
        %v846 = vpop.f32.mrb[0].mxu0
        %v847 = vadd.f32 0.0, %v846
        %v848 = vpop.f32.mrb[0].mxu0
        %849 = vmatprep.mubr.f32.mxu0 0.0
        %850 = vmatmul.mubr.f32.gmra.mrb[0].mxu0 %v724
        %v851 = vpop.f32.mrb[0].mxu0
        %v852 = vadd.f32 0.0, %v851
        %v853 = vpop.f32.mrb[0].mxu0
        %854 = vmatprep.mubr.f32.mxu0 0.0
        %855 = vmatmul.mubr.f32.gmra.mrb[0].mxu0 %v727
        %v856 = vpop.f32.mrb[0].mxu0
        %v857 = vadd.f32 0.0, %v856
        %v858 = vpop.f32.mrb[0].mxu0
        %859 = vmatprep.mubr.f32.mxu0 0.0
        %860 = vmatmul.mubr.f32.gmra.mrb[0].mxu0 %v730
        %v861 = vpop.f32.mrb[0].mxu0
        %v862 = vadd.f32 0.0, %v861
        %v863 = vpop.f32.mrb[0].mxu0
        %864 = vmatprep.mubr.f32.mxu0 0.0
        %865 = vmatmul.mubr.f32.gmra.mrb[0].mxu0 %v733
        %v866 = vpop.f32.mrb[0].mxu0
        %v867 = vadd.f32 0.0, %v866
        %v868 = vpop.f32.mrb[0].mxu0
        %869 = vmatprep.mubr.f32.mxu0 0.0
        %870 = vmatmul.mubr.f32.gmra.mrb[0].mxu0 %v736
        %v871 = vpop.f32.mrb[0].mxu0
        %v872 = vadd.f32 0.0, %v871
        %v873 = vpop.f32.mrb[0].mxu0
        %874 = vmatprep.mubr.f32.mxu0 0.0
        %875 = vmatmul.mubr.f32.gmra.mrb[0].mxu0 %v739
        %v876 = vpop.f32.mrb[0].mxu0
        %v877 = vadd.f32 0.0, %v876
        %v878 = vpop.f32.mrb[0].mxu0
        %879 = vmatprep.mubr.f32.mxu0 0.0
        %880 = vmatmul.mubr.f32.gmra.mrb[0].mxu0 %v742
        %v881 = vpop.f32.mrb[0].mxu0
        %v882 = vadd.f32 0.0, %v881
        %v883 = vpop.f32.mrb[0].mxu0
        %884 = vmatprep.mubr.f32.mxu0 0.0
        %885 = vmatmul.mubr.f32.gmra.mrb[0].mxu0 %v745
        %v886 = vpop.f32.mrb[0].mxu0
        %v887 = vadd.f32 0.0, %v886
        %v888 = vpop.f32.mrb[0].mxu0
        %889 = vmatprep.mubr.f32.mxu0 0.0
        %890 = vmatmul.mubr.f32.gmra.mrb[0].mxu0 %v748
        %v891 = vpop.f32.mrb[0].mxu0
        %v892 = vadd.f32 0.0, %v891
        %v893 = vpop.f32.mrb[0].mxu0
        %894 = vdwg.mxu0
        %v895 = vmul.f32 %v622, %v817
        %v896 = vmul.f32 %v627, %v822
        %v897 = vmul.f32 %v632, %v827
        %v898 = vmul.f32 %v637, %v832
        %v899 = vmul.f32 %v642, %v837
        %v900 = vmul.f32 %v647, %v842
        %v901 = vmul.f32 %v652, %v847
        %v902 = vmul.f32 %v657, %v852
        %v903 = vmul.f32 %v662, %v857
        %v904 = vmul.f32 %v667, %v862
        %v905 = vmul.f32 %v672, %v867
        %v906 = vmul.f32 %v677, %v872
        %v907 = vmul.f32 %v682, %v877
        %v908 = vmul.f32 %v687, %v882
        %v909 = vmul.f32 %v692, %v887
        %v910 = vmul.f32 %v697, %v892
        %vm911 = vcmask 261120
        %v912 = vsel %vm911, %v895, 0.0
        %913 = vadd.xlane.f32.xlu0 %v912
        %v914 = vpop.xlane.xlu0 %913
        %v915 = vsel %vm911, %v896, 0.0
        %916 = vadd.xlane.f32.xlu0 %v915
        %v917 = vpop.xlane.xlu0 %916
        %v918 = vsel %vm911, %v897, 0.0
        %919 = vadd.xlane.f32.xlu0 %v918
        %v920 = vpop.xlane.xlu0 %919
        %v921 = vsel %vm911, %v898, 0.0
        %922 = vadd.xlane.f32.xlu0 %v921
        %v923 = vpop.xlane.xlu0 %922
        %v924 = vsel %vm911, %v899, 0.0
        %925 = vadd.xlane.f32.xlu0 %v924
        %v926 = vpop.xlane.xlu0 %925
        %v927 = vsel %vm911, %v900, 0.0
        %928 = vadd.xlane.f32.xlu0 %v927
        %v929 = vpop.xlane.xlu0 %928
        %v930 = vsel %vm911, %v901, 0.0
        %931 = vadd.xlane.f32.xlu0 %v930
        %v932 = vpop.xlane.xlu0 %931
        %v933 = vsel %vm911, %v902, 0.0
        %934 = vadd.xlane.f32.xlu0 %v933
        %v935 = vpop.xlane.xlu0 %934
        %v936 = vsel %vm911, %v903, 0.0
        %937 = vadd.xlane.f32.xlu0 %v936
        %v938 = vpop.xlane.xlu0 %937
        %v939 = vsel %vm911, %v904, 0.0
        %940 = vadd.xlane.f32.xlu0 %v939
        %v941 = vpop.xlane.xlu0 %940
        %v942 = vsel %vm911, %v905, 0.0
        %943 = vadd.xlane.f32.xlu0 %v942
        %v944 = vpop.xlane.xlu0 %943
        %v945 = vsel %vm911, %v906, 0.0
        %946 = vadd.xlane.f32.xlu0 %v945
        %v947 = vpop.xlane.xlu0 %946
        %v948 = vsel %vm911, %v907, 0.0
        %949 = vadd.xlane.f32.xlu0 %v948
        %v950 = vpop.xlane.xlu0 %949
        %v951 = vsel %vm911, %v908, 0.0
        %952 = vadd.xlane.f32.xlu0 %v951
        %v953 = vpop.xlane.xlu0 %952
        %v954 = vsel %vm911, %v909, 0.0
        %955 = vadd.xlane.f32.xlu0 %v954
        %v956 = vpop.xlane.xlu0 %955
        %v957 = vsel %vm911, %v910, 0.0
        %958 = vadd.xlane.f32.xlu0 %v957
        %v959 = vpop.xlane.xlu0 %958
        %s960 = sld [smem:[#allocation2]]
        %v961 = vstv %s960
        %v962 = vadd.f32 %v914, %v961
        %v963 = vadd.f32 %v917, %v961
        %v964 = vadd.f32 %v920, %v961
        %v965 = vadd.f32 %v923, %v961
        %v966 = vadd.f32 %v926, %v961
        %v967 = vadd.f32 %v929, %v961
        %v968 = vadd.f32 %v932, %v961
        %v969 = vadd.f32 %v935, %v961
        %v970 = vadd.f32 %v938, %v961
        %v971 = vadd.f32 %v941, %v961
        %v972 = vadd.f32 %v944, %v961
        %v973 = vadd.f32 %v947, %v961
        %v974 = vadd.f32 %v950, %v961
        %v975 = vadd.f32 %v953, %v961
        %v976 = vadd.f32 %v956, %v961
        %v977 = vadd.f32 %v959, %v961
        %s978 = sadd.s32 %s24, %s25
        %s979 = smul.u32 %s978, 128
        %v980 = vlaneseq
        %v981 = vshrl.u32 %v980, 7
        %v982 = vmul.u32 %v981, 128
        %v983 = vstv %s979
        %v984 = vadd.s32 %v983, %v982
        %v985 = vadd.s32 %v984, %v311
        %vm986 = vcmp.lt.s32.totalorder %v985, 32
        %v987 = vsel %vm986, 1.0, -1.0
        %vm988 = vcmp.lt.s32.totalorder %v985, 64
        %v989 = vsel %vm988, 1.0, 0.0
        %v990 = vsub.f32 0.0, %v987
        %v1007 = vlaneseq
        %v1008 = vshrl.u32 %v1007, 7
        %v1009 = vsub.s32 %v311, %v1008
        %v1010 = vrot.slane %v962, %v1009
        %v1011 = vadd.s32 %v311, 4294967288
        %v1012 = vlaneseq
        %v1013 = vshrl.u32 %v1012, 7
        %v1014 = vsub.s32 %v1011, %v1013
        %v1015 = vrot.slane %v963, %v1014
        %vm1016 = vcmask 130112
        %v1017 = vsel %vm1016, %v1015, %v1010
        %v1018 = vadd.s32 %v311, 4294967280
        %v1019 = vlaneseq
        %v1020 = vshrl.u32 %v1019, 7
        %v1021 = vsub.s32 %v1018, %v1020
        %v1022 = vrot.slane %v964, %v1021
        %vm1023 = vcmask 195712
        %v1024 = vsel %vm1023, %v1022, %v1017
        %v1025 = vadd.s32 %v311, 4294967272
        %v1026 = vlaneseq
        %v1027 = vshrl.u32 %v1026, 7
        %v1028 = vsub.s32 %v1025, %v1027
        %v1029 = vrot.slane %v965, %v1028
        %vm1030 = vcmask 261312
        %v1031 = vsel %vm1030, %v1029, %v1024
        %v1032 = vadd.s32 %v311, 4294967264
        %v1033 = vlaneseq
        %v1034 = vshrl.u32 %v1033, 7
        %v1035 = vsub.s32 %v1032, %v1034
        %v1036 = vrot.slane %v966, %v1035
        %vm1037 = vcmask 326912
        %v1038 = vsel %vm1037, %v1036, %v1031
        %v1039 = vadd.s32 %v311, 4294967256
        %v1040 = vlaneseq
        %v1041 = vshrl.u32 %v1040, 7
        %v1042 = vsub.s32 %v1039, %v1041
        %v1043 = vrot.slane %v967, %v1042
        %vm1044 = vcmask 392512
        %v1045 = vsel %vm1044, %v1043, %v1038
        %v1046 = vadd.s32 %v311, 4294967248
        %v1047 = vlaneseq
        %v1048 = vshrl.u32 %v1047, 7
        %v1049 = vsub.s32 %v1046, %v1048
        %v1050 = vrot.slane %v968, %v1049
        %vm1051 = vcmask 458112
        %v1052 = vsel %vm1051, %v1050, %v1045
        %v1053 = vadd.s32 %v311, 4294967240
        %v1054 = vlaneseq
        %v1055 = vshrl.u32 %v1054, 7
        %v1056 = vsub.s32 %v1053, %v1055
        %v1057 = vrot.slane %v969, %v1056
        %vm1058 = vcmask 523712
        %v1059 = vsel %vm1058, %v1057, %v1052
        %v1060 = vadd.s32 %v311, 4294967232
        %v1061 = vlaneseq
        %v1062 = vshrl.u32 %v1061, 7
        %v1063 = vsub.s32 %v1060, %v1062
        %v1064 = vrot.slane %v970, %v1063
        %vm1065 = vcmask 589312
        %v1066 = vsel %vm1065, %v1064, %v1059
        %v1067 = vadd.s32 %v311, 4294967224
        %v1068 = vlaneseq
        %v1069 = vshrl.u32 %v1068, 7
        %v1070 = vsub.s32 %v1067, %v1069
        %v1071 = vrot.slane %v971, %v1070
        %vm1072 = vcmask 654912
        %v1073 = vsel %vm1072, %v1071, %v1066
        %v1074 = vadd.s32 %v311, 4294967216
        %v1075 = vlaneseq
        %v1076 = vshrl.u32 %v1075, 7
        %v1077 = vsub.s32 %v1074, %v1076
        %v1078 = vrot.slane %v972, %v1077
        %vm1079 = vcmask 720512
        %v1080 = vsel %vm1079, %v1078, %v1073
        %v1081 = vadd.s32 %v311, 4294967208
        %v1082 = vlaneseq
        %v1083 = vshrl.u32 %v1082, 7
        %v1084 = vsub.s32 %v1081, %v1083
        %v1085 = vrot.slane %v973, %v1084
        %vm1086 = vcmask 786112
        %v1087 = vsel %vm1086, %v1085, %v1080
        %v1088 = vadd.s32 %v311, 4294967200
        %v1089 = vlaneseq
        %v1090 = vshrl.u32 %v1089, 7
        %v1091 = vsub.s32 %v1088, %v1090
        %v1092 = vrot.slane %v974, %v1091
        %vm1093 = vcmask 851712
        %v1094 = vsel %vm1093, %v1092, %v1087
        %v1095 = vadd.s32 %v311, 4294967192
        %v1096 = vlaneseq
        %v1097 = vshrl.u32 %v1096, 7
        %v1098 = vsub.s32 %v1095, %v1097
        %v1099 = vrot.slane %v975, %v1098
        %vm1100 = vcmask 917312
        %v1101 = vsel %vm1100, %v1099, %v1094
        %v1102 = vadd.s32 %v311, 4294967184
        %v1103 = vlaneseq
        %v1104 = vshrl.u32 %v1103, 7
        %v1105 = vsub.s32 %v1102, %v1104
        %v1106 = vrot.slane %v976, %v1105
        %vm1107 = vcmask 982912
        %v1108 = vsel %vm1107, %v1106, %v1101
        %v1109 = vadd.s32 %v311, 4294967176
        %v1110 = vlaneseq
        %v1111 = vshrl.u32 %v1110, 7
        %v1112 = vsub.s32 %v1109, %v1111
        %v1113 = vrot.slane %v977, %v1112
        %vm1114 = vcmask 1048512
        %v1115 = vsel %vm1114, %v1113, %v1108
        %v1117 = vmul.f32 %v990, %v1115
        %v1118 = vmax.f32 %v1117, 0.0
        %v1119 = vand.u32 2147483647, %v1117
        %v1120 = vsub.f32 0.0, %v1119
        %v1121 = vmul.f32 %v1120, 1.442695
        %v1122 = vpow.pop %v1121
        %v1123 = vadd.f32 %v1122, 1.0
        %v1124 = vlog2.pop %v1123
        %v1125 = vmul.f32 %v1124, 0.6931472
        %v1126 = vmul.f32 -0.5, %v1122
        %v1127 = vadd.f32 %v1126, 1.0
        %v1128 = vmul.f32 %v1127, %v1122
        %v1129 = vand.u32 2147483647, %v1122
        %vm1130 = vcmp.lt.f32.partialorder %v1129, 0.0004427343
        %v1131 = vsel %vm1130, %v1128, %v1125
        %v1132 = vadd.f32 %v1118, %v1131
        %v1133 = vmin.f32 %v1132, 100.0
        %v1134 = vld [vmem:[%s256] sm:$0x1]
        %v1135 = vmul.f32 %v989, %v1133
        %v1136 = vadd.f32 %v1134, %v1135
        %1137 = vst [vmem:[%s256] sm:$0x1] %v1136
        %s1138 = sand.u32 %s159, 1
        %s1139 = scalar_lea.sflag [#allocation4], %s1138
        %s1140 = sand.u32 %s159, 1
        %s1141 = scalar_lea.vmem [#allocation3], %s1140
        // Predicated region
        $region45: #{tpu_custom_call.1} parent=39 // pred_check
          %p1142 = pneg %p169
        $region46: #{tpu_custom_call.1} parent=39 // pred_check_branch
          %1144 = sbr.rel (%p1142) target = $region48
        $region47: #{tpu_custom_call.1} parent=39 // pred_region
          %s1146 = ssub.s32 16, 16
          %1147 = vsyncadd %s1139, %s1146
          %s1148 = smul.addr %s24, 16
          %s1149 = scalar_lea.hbm %s5, %s1148
          %s1151 = sshll.u32 %s1141, 4
          %s1152 = int_to_ptr.vmem [resolvable:$true] %s1151
          %1154 = dma.vmem_to_hbm [thread:$0]  %s1152, 16, %s1149, %s1139
        $region48: #{tpu_custom_call.1} parent=39 // pred_fallthru
          _
      $region40: #{tpu_custom_call.1} parent=5 // pred_fallthru
        _
      %p1155 = scmp.le.s32.totalorder 2, %s15
      // Predicated region
      $region49: #{tpu_custom_call.1} parent=5 // pred_check
        %p1156 = pneg %p1155
      $region50: #{tpu_custom_call.1} parent=5 // pred_check_branch
        %1158 = sbr.rel (%p1156) target = $region52
      $region51: #{tpu_custom_call.1} parent=5 // pred_region
        %s1159 = ssub.s32 %s15, 2
        // Predicated region
        $region53: #{tpu_custom_call.1} parent=51 // pred_check
          %p1160 = pneg %p175
        $region54: #{tpu_custom_call.1} parent=51 // pred_check_branch
          %1162 = sbr.rel (%p1160) target = $region56
        $region55: #{tpu_custom_call.1} parent=51 // pred_region
          %s1163 = sand.u32 %s160, 1
          %s1164 = scalar_lea.sflag [#allocation4], %s1163
          %s1165 = sand.u32 %s160, 1
          %s1166 = scalar_lea.vmem [#allocation3], %s1165
          %1167 = dma.done %s1164, 16
        $region56: #{tpu_custom_call.1} parent=51 // pred_fallthru
          _
      $region52: #{tpu_custom_call.1} parent=5 // pred_fallthru
        _
    $region6: #{tpu_custom_call.1} parent=1 // loop_footer
      %s19 = sadd.s32 1, %s15
    $region7: #{tpu_custom_call.1} parent=1 // loop_footer_branch
      %14 = sbr.rel target = $region3
    $region8: #{tpu_custom_call.1} parent=1 // loop_exit
      _
    %1168 = vsyncpa [#allocation4], 1
    %s1169 = scalar_lea.sflag [#allocation4], 1
    %1170 = vsyncpa %s1169, 1

</llo_original>
